<compile_context>
chip_gen: v7x
topology: tpu7x:2x2x1
jax: 0.10.0
libtpu: 0.0.40
codegen_flags: <defaults>
</compile_context>

<pallas_src>
import jax
import jax.numpy as jnp
from jax.experimental import pallas as pl
from jax.experimental.pallas import tpu as pltpu


# ---------------------------------------------------------------------------
# Kernels
# ---------------------------------------------------------------------------

def _simple_kernel(z_ref, mask_ref, out_ref):
    # z_ref:    (tile_b, C) tile in VMEM
    # mask_ref: (tile_b, 1) drop mask tile (1 => zero that row), same dtype as z
    # out_ref:  (tile_b, C)
    keep = 1.0 - mask_ref[...]            # (tile_b, 1)
    out_ref[...] = z_ref[...] * keep       # broadcast across the lane (channel) axis


def _make_packed_kernel(k: int, C: int):
    """Kernel for the lane-dense packed layout: z as (B//k, k*C), mask as (B//k, k)."""
    kC = k * C

    def kernel(z_ref, mask_ref, out_ref):
        tile_b = z_ref.shape[0]
        keep = 1.0 - mask_ref[...]                                   # (tile_b, k)
        # Expand each of the k per-row keep factors across its C-lane group.
        # Lanes [j*C, (j+1)*C) belong to original row j of the packed group.
        lane = jax.lax.broadcasted_iota(jnp.int32, (tile_b, kC), 1)  # 0..kC-1
        keep_exp = jnp.broadcast_to(keep[:, 0:1], (tile_b, kC))
        for j in range(1, k):                                        # k is small & static
            keep_exp = jnp.where(lane >= j * C, keep[:, j:j + 1], keep_exp)
        out_ref[...] = z_ref[...] * keep_exp

    return kernel


# ---------------------------------------------------------------------------
# Sizing helpers
# ---------------------------------------------------------------------------

def _round_up(x: int, m: int) -> int:
    return -(-x // m) * m


def _vmem_limit_bytes() -> int:
    """Pick a scoped-VMEM limit with headroom for Mosaic internal scratch."""
    try:
        cap = pltpu.get_tpu_info().vmem_capacity_bytes
    except Exception:
        return 32 * 1024 * 1024
    if cap >= 128 * 1024 * 1024:            # v5e / v6e (128 MiB physical)
        return 64 * 1024 * 1024
    # v7x: 64 MiB physical -> leave headroom.
    return max(32 * 1024 * 1024, min((cap * 3) // 4, 48 * 1024 * 1024))


def _choose_tile_rows(n_rows: int, lane_width: int, itemsize: int,
                      mask_itemsize: int, budget_bytes: int) -> int:
    """Pick a row-tile whose *padded*, double-buffered VMEM footprint fits budget.

    Footprint per row = 2 buffers * (z-in + z-out + mask), where the z blocks
    pad the lane axis to a multiple of 128 and the mask block pads to 128 lanes.
    """
    w_pad = _round_up(lane_width, 128)
    per_row = 2 * (2 * w_pad * itemsize + 128 * mask_itemsize)
    rows = max(8, budget_bytes // per_row)
    rows = (rows // 8) * 8                  # sublane (8) alignment for tiled blocks
    if rows >= n_rows:
        # Everything fits in one tile.  Split into two tiles when possible so
        # both v7x TensorCores get work under dimension_semantics=("parallel",).
        if n_rows >= 16:
            return min(_round_up(-(-n_rows // 2), 8), n_rows)
        return n_rows                       # full-dim block is always legal
    return rows


# ---------------------------------------------------------------------------
# Public wrapper
# ---------------------------------------------------------------------------

def latent_embedding(z: jax.Array,
                     drop_mask: jax.Array,
                     *,
                     donate_z: bool = False,
                     tile_budget_bytes: int | None = None) -> jax.Array:
    """Pallas equivalent of LatentEmbedding(n_channels).forward(z, drop_mask).

    z:         (B, n_channels) float array
    drop_mask: (B,) float (0. or 1.) array
    returns:   (B, n_channels) array, same dtype as z
    """
    B, C = z.shape
    assert drop_mask.shape == (B,)

    itemsize = jnp.dtype(z.dtype).itemsize
    vmem_limit = _vmem_limit_bytes()
    budget = tile_budget_bytes if tile_budget_bytes is not None else (vmem_limit * 3) // 4

    extra_kwargs = {}
    if donate_z:
        # Output reuses z's HBM buffer.  Caller must not read z afterwards.
        extra_kwargs["input_output_aliases"] = {0: 0}

    compiler_params = pltpu.CompilerParams(
        dimension_semantics=("parallel",),       # megacore sharding on v7x
        vmem_limit_bytes=vmem_limit,
    )
    cost = pl.CostEstimate(
        flops=2 * B * C,
        transcendentals=0,
        bytes_accessed=2 * B * C * itemsize + B * itemsize,
    )

    # ---- Lane-dense packed path for narrow channels (e.g. the default C=32). ----
    use_packed = (C < 128) and (128 % C == 0) and (B % (128 // C) == 0) and B >= (128 // C)
    if use_packed:
        k = 128 // C
        Bp, kC = B // k, k * C                  # kC == 128 (lane-dense, unmasked stores)
        z_p = z.reshape(Bp, kC)                 # free row-major view
        mask_p = drop_mask.astype(z.dtype).reshape(Bp, k)

        tile_b = _choose_tile_rows(Bp, kC, itemsize, itemsize, budget)
        grid = (pl.cdiv(Bp, tile_b),)

        out_p = pl.pallas_call(
            _make_packed_kernel(k, C),
            out_shape=jax.ShapeDtypeStruct((Bp, kC), z.dtype),
            grid=grid,
            in_specs=[
                pl.BlockSpec((tile_b, kC), lambda i: (i, 0)),
                pl.BlockSpec((tile_b, k), lambda i: (i, 0)),
            ],
            out_specs=pl.BlockSpec((tile_b, kC), lambda i: (i, 0)),
            compiler_params=compiler_params,
            cost_estimate=cost,
            **extra_kwargs,
        )(z_p, mask_p)
        return out_p.reshape(B, C)

    # ---- General path (C >= 128, C a non-divisor of 128, or tiny/ragged B). ----
    # TODO(synk): for C < 128 with 128 % C != 0, stores are lane-masked; a padded
    # lane-dense repack would help but is not worth the extra HBM copy here.
    mask2d = drop_mask.astype(z.dtype).reshape(B, 1)
    tile_b = _choose_tile_rows(B, C, itemsize, itemsize, budget)
    grid = (pl.cdiv(B, tile_b),)

    return pl.pallas_call(
        _simple_kernel,
        out_shape=jax.ShapeDtypeStruct((B, C), z.dtype),
        grid=grid,
        in_specs=[
            pl.BlockSpec((tile_b, C), lambda i: (i, 0)),
            pl.BlockSpec((tile_b, 1), lambda i: (i, 0)),
        ],
        out_specs=pl.BlockSpec((tile_b, C), lambda i: (i, 0)),
        compiler_params=compiler_params,
        cost_estimate=cost,
        **extra_kwargs,
    )(z, mask2d)


def _reference(z, drop_mask):
    return z * (1.0 - drop_mask[:, None].astype(z.dtype))


# ---------------------------------------------------------------------------
# Self-test
# ---------------------------------------------------------------------------

if __name__ == "__main__":
    key = jax.random.PRNGKey(0)
    k0, k1, k2, k3, k4, k5 = jax.random.split(key, 6)

    # Case 1: module-sized small shape (batch=2, n_channels=32) -> general path,
    # single full-extent block (B=2 is not a multiple of the pack factor 4).
    z1 = jax.random.normal(k0, (2, 32), dtype=jnp.float32)
    dm1 = jax.random.bernoulli(k1, p=0.5, shape=(2,)).astype(jnp.float32)
    out1 = jax.block_until_ready(latent_embedding(z1, dm1))
    assert jnp.allclose(out1, _reference(z1, dm1)), "mismatch (small case)"

    # Case 2: lane-dense packed path (C=32 -> 4 rows packed into 128 lanes),
    # grid of 2 tiles so both v7x TensorCores would get work.
    z2 = jax.random.normal(k2, (256, 32), dtype=jnp.float32)
    dm2 = jax.random.bernoulli(k3, p=0.5, shape=(256,)).astype(jnp.float32)
    out2 = jax.block_until_ready(latent_embedding(z2, dm2))
    assert jnp.allclose(out2, _reference(z2, dm2)), "mismatch (packed case)"

    # Case 3: wide-C multi-tile path with a ragged (padded) trailing block.
    z3 = jax.random.normal(k4, (200, 256), dtype=jnp.float32)
    dm3 = jax.random.bernoulli(k5, p=0.5, shape=(200,)).astype(jnp.float32)
    out3 = jax.block_until_ready(
        latent_embedding(z3, dm3, tile_budget_bytes=64 * 1024))  # forces many tiles
    assert jnp.allclose(out3, _reference(z3, dm3)), "mismatch (tiled wide case)"

    print("KERNEL_OK")
</pallas_src>

<mosaic_0001>
module attributes {stable_mosaic.version = 11 : i64} {
  func.func @_simple_kernel(%arg0: i32, %arg1: memref<2x32xf32, #tpu.memory_space<vmem>>, %arg2: memref<2x1xf32, #tpu.memory_space<vmem>>, %arg3: memref<2x32xf32, #tpu.memory_space<vmem>>) attributes {dimension_semantics = [#tpu.dimension_semantics<parallel>], iteration_bounds = array<i64: 1>, scalar_prefetch = 0 : i64, scratch_operands = 0 : i64, tpu.core_type = #tpu.core_type<tc>, window_params = [{transform_indices = @transform_0, window_bounds = array<i64: 2, 32>}, {transform_indices = @transform_1, window_bounds = array<i64: 2, 1>}, {transform_indices = @transform_2, window_bounds = array<i64: 2, 32>}]} {
    %c0 = arith.constant 0 : index
    %c0_0 = arith.constant 0 : index
    %0 = vector.load %arg2[%c0, %c0_0] : memref<2x1xf32, #tpu.memory_space<vmem>>, vector<2x1xf32>
    %cst = arith.constant 1.000000e+00 : f32
    %1 = vector.broadcast %cst : f32 to vector<2x1xf32>
    %2 = arith.subf %1, %0 : vector<2x1xf32>
    %c0_1 = arith.constant 0 : index
    %c0_2 = arith.constant 0 : index
    %3 = vector.load %arg1[%c0_1, %c0_2] : memref<2x32xf32, #tpu.memory_space<vmem>>, vector<2x32xf32>
    %4 = vector.broadcast %2 : vector<2x1xf32> to vector<2x32xf32>
    %5 = arith.mulf %3, %4 : vector<2x32xf32>
    %c0_3 = arith.constant 0 : index
    %c0_4 = arith.constant 0 : index
    %6 = vector.load %arg3[%c0_3, %c0_4] : memref<2x32xf32, #tpu.memory_space<vmem>>, vector<2x32xf32>
    tpu.vector_store %arg3[%c0_3, %c0_4], %5 {strides = array<i32>} : memref<2x32xf32, #tpu.memory_space<vmem>>, vector<2x32xf32>,
    return
  }
  func.func @transform_0(%arg0: i32) -> (i32, i32) {
    %c0_i32 = arith.constant 0 : i32
    %c0_i32_0 = arith.constant 0 : i32
    return %arg0, %c0_i32 : i32, i32
  }
  func.func @transform_1(%arg0: i32) -> (i32, i32) {
    %c0_i32 = arith.constant 0 : i32
    %c0_i32_0 = arith.constant 0 : i32
    return %arg0, %c0_i32 : i32, i32
  }
  func.func @transform_2(%arg0: i32) -> (i32, i32) {
    %c0_i32 = arith.constant 0 : i32
    %c0_i32_0 = arith.constant 0 : i32
    return %arg0, %c0_i32 : i32, i32
  }
}

</mosaic_0001>

<llo_original>
// kernel: tpu_custom_call.1
$region0: #{tpu_custom_call.1}
  #allocation0 [shape = 'u32[]', space=smem, size = 0x4, offset = 0x4, fixed_abs, tag = 'smem constant byte address 0x4 - core index']
  #allocation1 [shape = 'u32[144,128]{1,0:T(1,128)}', space=vmem, size = 0x12000, scoped, tag = 'internal scratch']
  %s0 = inlined_call_operand.vmem [shape: f32[2,32], index: 0, kind: input, shape index: {}]
  %s1 = inlined_call_operand.vmem [shape: f32[2,1], index: 1, kind: input, shape index: {}]
  %s2 = inlined_call_operand.hbm [shape: f32[2,32], index: 2, kind: output, shape index: {}]
  %s3 = sld [smem:[#allocation0]]
  $region18: #{tpu_custom_call.1} parent=0
    _
  %s5 = ssub.s32 1, %s3
  %s6 = scalar_select 0, %s5, %s3
  $region1: #{tpu_custom_call.1} parent=0
    #allocation2 [shape = 'u8[1024]{0}', space=vmem, size = 0x400, scoped, tag = 'output window, operand 0, single buffered']
    #allocation3 [shape = 's32[1]{0}', space=sflag, size = 0x4, scoped, tag = 'scoped memory for tpu_custom_call.1']
    %7 = vsyncpa [#allocation3], 0
    // Predicated region
    $region2: #{tpu_custom_call.1} parent=1 // pred_check
      _
    $region3: #{tpu_custom_call.1} parent=1 // pred_check_branch
      %9 = sbr.rel (0) target = $region5
    $region4: #{tpu_custom_call.1} parent=1 // pred_region
      _
    $region5: #{tpu_custom_call.1} parent=1 // pred_fallthru
      _
    // Predicated region
    $region6: #{tpu_custom_call.1} parent=1 // pred_check
      _
    $region7: #{tpu_custom_call.1} parent=1 // pred_check_branch
      %11 = sbr.rel (0) target = $region9
    $region8: #{tpu_custom_call.1} parent=1 // pred_region
      _
    $region9: #{tpu_custom_call.1} parent=1 // pred_fallthru
      _
    %v12 = vld [vmem:[%s1] sm:$0x3]
    %v13 = vsub.f32 1.0, %v12
    %v14 = vld [vmem:[%s0] sm:$0x3]
    %16 = vset.pattern.permute.xlu0 0
    %17 = vperm.xlu0 %16, %v13
    %v18 = vpop.permute.xlu0 %17
    %v20 = vmul.f32 %v14, %v18
    %vm21 = vcmask 254976
    %22 = vst.msk [vmem:[#allocation2] sm:$0x3] %vm21, %v20
    // Predicated region
    $region10: #{tpu_custom_call.1} parent=1 // pred_check
      _
    $region11: #{tpu_custom_call.1} parent=1 // pred_check_branch
      %24 = sbr.rel (0) target = $region13
    $region12: #{tpu_custom_call.1} parent=1 // pred_region
      %s26 = ssub.s32 32, 32
      %27 = vsyncadd [#allocation3], %s26
      %s29 = sshll.u32 [#allocation2], 4
      %s30 = int_to_ptr.vmem [resolvable:$true] %s29
      %32 = dma.vmem_to_hbm [thread:$0]  %s30, 32, %s2, [#allocation3]
    $region13: #{tpu_custom_call.1} parent=1 // pred_fallthru
      _
    // Predicated region
    $region14: #{tpu_custom_call.1} parent=1 // pred_check
      _
    $region15: #{tpu_custom_call.1} parent=1 // pred_check_branch
      %34 = sbr.rel (0) target = $region17
    $region16: #{tpu_custom_call.1} parent=1 // pred_region
      %35 = dma.done [#allocation3], 32
    $region17: #{tpu_custom_call.1} parent=1 // pred_fallthru
      _
    %36 = vsyncpa [#allocation3], 1

</llo_original>
